<compile_context>
chip_gen: v6e
topology: v6e:2x2x1
jax: 0.10.0
libtpu: 0.0.40
codegen_flags: <defaults>
</compile_context>

<pallas_src>
import math
import functools

import jax
import jax.numpy as jnp
from jax.experimental import pallas as pl
from jax.experimental.pallas import tpu as pltpu


_LANE = 128


def _round_up(x, m):
    return ((x + m - 1) // m) * m


def _sublane_multiple(dtype):
    """Minimum second-to-last tile dim for this dtype (8 f32, 16 bf16, 32 int8)."""
    itemsize = jnp.dtype(dtype).itemsize
    return max(8, 32 // itemsize)


def _vmem_capacity_bytes():
    """Physical VMEM of the current TPU generation (fallback: 64 MiB = v7x)."""
    try:
        return int(pltpu.get_tpu_info().vmem_capacity_bytes)
    except Exception:
        return 64 * 1024 * 1024


# ----------------------------------------------------------------------------
# Kernels
# ----------------------------------------------------------------------------
def _rpl_kernel_acc(x_ref, wt_ref, b_ref, o_ref, acc_ref):
    """Grid step (i, j, k) of Y = X @ W^T + b with an f32 scratch accumulator.

    Used when the output dtype is narrower than f32 (e.g. bf16).
    x_ref:   (tm, tk)   input tile
    wt_ref:  (tk, tn)   pre-transposed weight tile (W^T stored as [K, N])
    b_ref:   (1, tn)    bias tile
    o_ref:   (tm, tn)   output tile
    acc_ref: (tm, tn)   f32 accumulator (persists across the K loop)
    """
    k = pl.program_id(2)

    @pl.when(k == 0)
    def _():
        # Fold the bias into the accumulator init (saves an epilogue VPU pass).
        acc_ref[...] = jnp.broadcast_to(
            b_ref[...].astype(jnp.float32), acc_ref.shape
        )

    acc_ref[...] += jnp.dot(
        x_ref[...], wt_ref[...], preferred_element_type=jnp.float32
    )

    @pl.when(k == pl.num_programs(2) - 1)
    def _():
        o_ref[...] = acc_ref[...].astype(o_ref.dtype)


def _rpl_kernel_f32(x_ref, wt_ref, b_ref, o_ref):
    """Grid step (i, j, k) of Y = X @ W^T + b, accumulating directly into the
    resident f32 output block (no scratch accumulator, no final cast/copy)."""
    k = pl.program_id(2)

    @pl.when(k == 0)
    def _():
        o_ref[...] = jnp.broadcast_to(
            b_ref[...].astype(jnp.float32), o_ref.shape
        )

    o_ref[...] += jnp.dot(
        x_ref[...], wt_ref[...], preferred_element_type=jnp.float32
    )


# ----------------------------------------------------------------------------
# Parameter preparation (one-time, outside the per-call forward path)
# ----------------------------------------------------------------------------
def prepare_row_parallel_weight(weight):
    """One-time HBM-side relayout of the weight.

    weight: [output_size, input_size_per_partition] (PyTorch layout, Y = X W^T)
    Returns W^T stored as [Kp, output_size] with Kp = round_up(K, 128); the K
    zero-padding is exact for the matmul. Doing this once at parameter-load
    time means the forward never re-transposes / re-pads the weight in HBM.
    """
    N, K = weight.shape
    wt = weight.T  # [K, N]
    Kp = _round_up(K, _LANE)
    if Kp != K:
        wt = jnp.pad(wt, ((0, Kp - K), (0, 0)))
    return wt


# ----------------------------------------------------------------------------
# Forward
# ----------------------------------------------------------------------------
@functools.partial(jax.jit, static_argnames=("tm", "tn", "tk_max"))
def row_parallel_linear_forward(x, weight_t, bias, *, tm=512, tn=512, tk_max=None):
    """Forward of RowParallelLinear at tensor_model_parallel_size == 1.

    x:        [batch, seq, input_size]
    weight_t: [Kp, output_size] pre-transposed weight from
              prepare_row_parallel_weight (Kp = round_up(input_size, 128)).
    bias:     [output_size]
    returns   [batch, seq, output_size] in x.dtype
    """
    B, S, K = x.shape
    Kp, N = weight_t.shape
    assert Kp == _round_up(K, _LANE) and Kp >= K, (
        "weight_t must come from prepare_row_parallel_weight (shape [round_up(K,128), N])"
    )
    assert bias.shape == (N,)
    M = B * S

    in_item = jnp.dtype(x.dtype).itemsize
    w_item = jnp.dtype(weight_t.dtype).itemsize
    b_item = jnp.dtype(bias.dtype).itemsize
    out_dtype = x.dtype
    out_item = jnp.dtype(out_dtype).itemsize
    use_acc_scratch = jnp.dtype(out_dtype) != jnp.dtype(jnp.float32)
    acc_item = 4 if use_acc_scratch else 0

    # ---- dtype-aware tile clamping (8 sublanes f32, 16 bf16, 32 int8) -------
    sub = _sublane_multiple(x.dtype)
    tm = max(sub, min(_round_up(tm, sub), _round_up(M, sub)))
    tn = max(_LANE, min(_round_up(tn, _LANE), _round_up(N, _LANE)))

    # ---- per-generation VMEM budget ------------------------------------------
    vmem_cap = _vmem_capacity_bytes()
    budget = int(0.70 * vmem_cap)          # tiles (incl. double-buffering)
    vmem_limit = int(0.85 * vmem_cap)      # scoped limit, headroom for compiler

    def _tile_bytes(tm_, tn_, tk_):
        return (
            2 * (tm_ * tk_ * in_item + tk_ * tn_ * w_item + tn_ * b_item)  # dbl-buf inputs
            + 2 * tm_ * tn_ * out_item                                      # dbl-buf output
            + tm_ * tn_ * acc_item                                          # f32 scratch (bf16 out)
        )

    # Shrink (tm, tn) only if even the minimum K tile would not fit the budget.
    while _tile_bytes(tm, tn, _LANE) > budget and (tm > sub or tn > _LANE):
        if tm >= tn and tm > sub:
            tm = max(sub, _round_up(tm // 2, sub))
        elif tn > _LANE:
            tn = max(_LANE, _round_up(tn // 2, _LANE))
        else:
            tm = max(sub, _round_up(tm // 2, sub))

    # Pick tk = largest divisor of Kp (multiple of 128) that fits the budget
    # (up to the whole K), so the reduction axis has as few steps as possible.
    kp_units = Kp // _LANE
    tk_cap = Kp if tk_max is None else max(_LANE, _round_up(min(tk_max, Kp), _LANE))
    tk = _LANE
    for d in range(kp_units, 0, -1):
        if kp_units % d:
            continue
        cand = d * _LANE
        if cand > tk_cap:
            continue
        if _tile_bytes(tm, tn, cand) <= budget:
            tk = cand
            break

    # ---- only the (rare) K remainder needs an explicit zero pad --------------
    x2d = x.reshape(M, K)
    if Kp != K:
        x2d = jnp.pad(x2d, ((0, 0), (0, Kp - K)))  # exact: zeros contribute nothing
    b2d = bias.reshape(1, N)

    # Partial M / N edge blocks are handled by Pallas (padded reads only affect
    # rows/cols that are masked out on the output write), so no activation or
    # output padding/slicing is materialized in HBM.
    grid = (pl.cdiv(M, tm), pl.cdiv(N, tn), Kp // tk)

    if use_acc_scratch:
        kernel = _rpl_kernel_acc
        scratch_shapes = [pltpu.VMEM((tm, tn), jnp.float32)]
    else:
        kernel = _rpl_kernel_f32
        scratch_shapes = []

    cost = pl.CostEstimate(
        flops=2 * M * N * K,
        transcendentals=0,
        bytes_accessed=(M * Kp * in_item + Kp * N * w_item
                        + M * N * out_item + N * b_item),
    )

    out2d = pl.pallas_call(
        kernel,
        out_shape=jax.ShapeDtypeStruct((M, N), out_dtype),
        grid_spec=pltpu.PrefetchScalarGridSpec(
            num_scalar_prefetch=0,
            grid=grid,
            in_specs=[
                pl.BlockSpec((tm, tk), lambda i, j, k: (i, k)),  # X tile
                pl.BlockSpec((tk, tn), lambda i, j, k: (k, j)),  # W^T tile
                pl.BlockSpec((1, tn), lambda i, j, k: (0, j)),   # bias tile
            ],
            out_specs=pl.BlockSpec((tm, tn), lambda i, j, k: (i, j)),
            scratch_shapes=scratch_shapes,
        ),
        compiler_params=pltpu.CompilerParams(
            # i/j are independent -> shard across TensorCores (megacore / v7x);
            # k is the reduction axis (resident accumulator), so "arbitrary".
            dimension_semantics=("parallel", "parallel", "arbitrary"),
            vmem_limit_bytes=vmem_limit,
        ),
        cost_estimate=cost,
    )(x2d, weight_t, b2d)

    # TODO(synk): reduce_from_tensor_model_parallel_region (all-reduce across TP
    # ranks) is the identity at world_size=1; a multi-chip version would use
    # pltpu.make_async_remote_copy + semaphores.
    return out2d.reshape(B, S, N)


# ----------------------------------------------------------------------------
# Init matching the module's defaults (TP world size = 1)
# ----------------------------------------------------------------------------
def init_row_parallel_linear_params(key, input_size, output_size, dtype=jnp.float32):
    """weight: kaiming_uniform_(a=sqrt(5)) on (output_size, input_size_per_partition)
               -> uniform(-1/sqrt(fan_in), 1/sqrt(fan_in)), fan_in = input_size_per_partition
       bias:   uniform(-1/sqrt(fan_in), +1/sqrt(fan_in))."""
    input_size_per_partition = input_size  # world_size == 1
    k_w, k_b = jax.random.split(key)
    bound = 1.0 / math.sqrt(input_size_per_partition)
    weight = jax.random.uniform(
        k_w, (output_size, input_size_per_partition), dtype=jnp.float32,
        minval=-bound, maxval=bound,
    ).astype(dtype)
    bias = jax.random.uniform(
        k_b, (output_size,), dtype=jnp.float32,
        minval=-bound, maxval=bound,
    ).astype(dtype)
    return weight, bias


if __name__ == "__main__":
    # Small shapes consistent with the module's [batch, sequence, hidden] input.
    batch, seq = 2, 8
    input_size, output_size = 256, 128

    key = jax.random.PRNGKey(0)
    k_x, k_p = jax.random.split(key)

    for dtype, tol in ((jnp.float32, 2e-2), (jnp.bfloat16, 3e-2)):
        x = jax.random.normal(
            k_x, (batch, seq, input_size), dtype=jnp.float32
        ).astype(dtype)
        weight, bias = init_row_parallel_linear_params(
            k_p, input_size, output_size, dtype=dtype
        )
        # One-time weight relayout (hoisted out of the per-call forward path).
        weight_t = prepare_row_parallel_weight(weight)

        out = row_parallel_linear_forward(x, weight_t, bias)
        out = jax.block_until_ready(out)

        # Reference (plain JAX, full precision) check of Y = X @ W^T + b.
        ref = jnp.einsum(
            "bsk,nk->bsn",
            x.astype(jnp.float32), weight.astype(jnp.float32),
            precision=jax.lax.Precision.HIGHEST,
        ) + bias.astype(jnp.float32)[None, None, :]

        assert out.shape == (batch, seq, output_size)
        assert out.dtype == jnp.dtype(dtype)
        assert jnp.allclose(out.astype(jnp.float32), ref, rtol=tol, atol=tol), (
            f"mismatch vs reference for dtype={dtype}"
        )

    print("KERNEL_OK")
</pallas_src>

<mosaic_0001>
module attributes {stable_mosaic.version = 11 : i64} {
  func.func @_rpl_kernel_f32(%arg0: i32, %arg1: i32, %arg2: i32, %arg3: memref<16x256xf32, #tpu.memory_space<vmem>>, %arg4: memref<256x128xf32, #tpu.memory_space<vmem>>, %arg5: memref<1x128xf32, #tpu.memory_space<vmem>>, %arg6: memref<16x128xf32, #tpu.memory_space<vmem>>) attributes {dimension_semantics = [#tpu.dimension_semantics<parallel>, #tpu.dimension_semantics<parallel>, #tpu.dimension_semantics<arbitrary>], iteration_bounds = array<i64: 1, 1, 1>, scalar_prefetch = 0 : i64, scratch_operands = 0 : i64, tpu.core_type = #tpu.core_type<tc>, window_params = [{transform_indices = @transform_0, window_bounds = array<i64: 16, 256>}, {transform_indices = @transform_1, window_bounds = array<i64: 256, 128>}, {transform_indices = @transform_2, window_bounds = array<i64: 1, 128>}, {transform_indices = @transform_3, window_bounds = array<i64: 16, 128>}]} {
    %c0_i32 = arith.constant 0 : i32
    %0 = arith.cmpi eq, %arg2, %c0_i32 : i32
    %1 = arith.extui %0 : i1 to i32
    %c0_i32_0 = arith.constant 0 : i32
    %2 = arith.cmpi ne, %1, %c0_i32_0 : i32
    scf.if %2 {
      %c0_8 = arith.constant 0 : index
      %c0_9 = arith.constant 0 : index
      %9 = vector.load %arg5[%c0_8, %c0_9] : memref<1x128xf32, #tpu.memory_space<vmem>>, vector<1x128xf32>
      %10 = vector.shape_cast %9 : vector<1x128xf32> to vector<1x128xf32>
      %11 = vector.broadcast %10 : vector<1x128xf32> to vector<16x128xf32>
      %c0_10 = arith.constant 0 : index
      %c0_11 = arith.constant 0 : index
      %12 = vector.load %arg6[%c0_10, %c0_11] : memref<16x128xf32, #tpu.memory_space<vmem>>, vector<16x128xf32>
      tpu.vector_store %arg6[%c0_10, %c0_11], %11 {strides = array<i32>} : memref<16x128xf32, #tpu.memory_space<vmem>>, vector<16x128xf32>,
    } else {
    }
    %c0 = arith.constant 0 : index
    %c0_1 = arith.constant 0 : index
    %3 = vector.load %arg6[%c0, %c0_1] : memref<16x128xf32, #tpu.memory_space<vmem>>, vector<16x128xf32>
    %c0_2 = arith.constant 0 : index
    %c0_3 = arith.constant 0 : index
    %4 = vector.load %arg3[%c0_2, %c0_3] : memref<16x256xf32, #tpu.memory_space<vmem>>, vector<16x256xf32>
    %c0_4 = arith.constant 0 : index
    %c0_5 = arith.constant 0 : index
    %5 = vector.load %arg4[%c0_4, %c0_5] : memref<256x128xf32, #tpu.memory_space<vmem>>, vector<256x128xf32>
    %cst = arith.constant dense<0.000000e+00> : vector<16x128xf32>
    %6 = tpu.matmul %4, %5, %cst {dimension_numbers = #tpu.dot_dimension_numbers<[1], [0], [0], [1], [0, 0, 1, 1], [], []>} : vector<16x256xf32>, vector<256x128xf32>, vector<16x128xf32> -> vector<16x128xf32>
    %7 = arith.addf %3, %6 : vector<16x128xf32>
    %c0_6 = arith.constant 0 : index
    %c0_7 = arith.constant 0 : index
    %8 = vector.load %arg6[%c0_6, %c0_7] : memref<16x128xf32, #tpu.memory_space<vmem>>, vector<16x128xf32>
    tpu.vector_store %arg6[%c0_6, %c0_7], %7 {strides = array<i32>} : memref<16x128xf32, #tpu.memory_space<vmem>>, vector<16x128xf32>,
    return
  }
  func.func @transform_0(%arg0: i32, %arg1: i32, %arg2: i32) -> (i32, i32) {
    %c0_i32 = arith.constant 0 : i32
    return %arg0, %arg2 : i32, i32
  }
  func.func @transform_1(%arg0: i32, %arg1: i32, %arg2: i32) -> (i32, i32) {
    %c0_i32 = arith.constant 0 : i32
    return %arg2, %arg1 : i32, i32
  }
  func.func @transform_2(%arg0: i32, %arg1: i32, %arg2: i32) -> (i32, i32) {
    %c0_i32 = arith.constant 0 : i32
    %c0_i32_0 = arith.constant 0 : i32
    return %c0_i32, %arg1 : i32, i32
  }
  func.func @transform_3(%arg0: i32, %arg1: i32, %arg2: i32) -> (i32, i32) {
    %c0_i32 = arith.constant 0 : i32
    return %arg0, %arg1 : i32, i32
  }
}

</mosaic_0001>

<llo_original>
// kernel: row_parallel_linear_forward.1
$region0: #{row_parallel_linear_forward.1}
  #allocation0 [shape = 'u32[]', space=smem, size = 0x4, offset = 0x4, fixed_abs, tag = 'smem constant byte address 0x4 - core index']
  #allocation1 [shape = 'u32[144,128]{1,0:T(1,128)}', space=vmem, size = 0x12000, scoped, tag = 'internal scratch']
  %s0 = inlined_call_operand.hbm [shape: f32[16,256], index: 0, kind: input, shape index: {}]
  %s1 = inlined_call_operand.hbm [shape: f32[256,128], index: 1, kind: input, shape index: {}]
  %s2 = inlined_call_operand.vmem [shape: f32[1,128], index: 2, kind: input, shape index: {}]
  %s3 = inlined_call_operand.hbm [shape: f32[16,128], index: 3, kind: output, shape index: {}]
  %s4 = sld [smem:[#allocation0]]
  $region34: #{row_parallel_linear_forward.1} parent=0
    _
  %s6 = ssub.s32 1, %s4
  %s7 = scalar_select 0, %s6, %s4
  $region1: #{row_parallel_linear_forward.1} parent=0
    #allocation2 [shape = 'u8[16384]{0}', space=vmem, size = 0x4000, scoped, tag = 'input window, operand 0, single buffered']
    #allocation3 [shape = 's32[1]{0}', space=sflag, size = 0x4, scoped, tag = 'scoped memory for row_parallel_linear_forward.1']
    #allocation4 [shape = 's32[1]{0}', space=sflag, size = 0x4, scoped, tag = 'scoped memory for row_parallel_linear_forward.1']
    #allocation5 [shape = 'u8[131072]{0}', space=vmem, size = 0x20000, scoped, tag = 'input window, operand 1, single buffered']
    #allocation6 [shape = 's32[1]{0}', space=sflag, size = 0x4, scoped, tag = 'scoped memory for row_parallel_linear_forward.1']
    #allocation7 [shape = 'u8[8192]{0}', space=vmem, size = 0x2000, scoped, tag = 'output window, operand 0, single buffered']
    %8 = vsyncpa [#allocation3], 0
    %9 = vsyncpa [#allocation6], 0
    %10 = vsyncpa [#allocation4], 0
    // Predicated region
    $region2: #{row_parallel_linear_forward.1} parent=1 // pred_check
      _
    $region3: #{row_parallel_linear_forward.1} parent=1 // pred_check_branch
      %12 = sbr.rel (0) target = $region5
    $region4: #{row_parallel_linear_forward.1} parent=1 // pred_region
      %s14 = ssub.s32 512, 512
      %15 = vsyncadd [#allocation3], %s14
      %s16 = sshll.u32 [#allocation2], 4
      %s17 = int_to_ptr.vmem [resolvable:$true] %s16
      %22 = dma.hbm_to_vmem [thread:$0]  %s0, 512, %s17, [#allocation3], 256, 256, 16
    $region5: #{row_parallel_linear_forward.1} parent=1 // pred_fallthru
      _
    // Predicated region
    $region6: #{row_parallel_linear_forward.1} parent=1 // pred_check
      _
    $region7: #{row_parallel_linear_forward.1} parent=1 // pred_check_branch
      %24 = sbr.rel (0) target = $region9
    $region8: #{row_parallel_linear_forward.1} parent=1 // pred_region
      %s26 = ssub.s32 4096, 4096
      %27 = vsyncadd [#allocation6], %s26
      %s28 = sshll.u32 [#allocation5], 4
      %s29 = int_to_ptr.vmem [resolvable:$true] %s28
      %34 = dma.hbm_to_vmem [thread:$0]  %s1, 4096, %s29, [#allocation6], 128, 128, 8
    $region9: #{row_parallel_linear_forward.1} parent=1 // pred_fallthru
      _
    // Predicated region
    $region10: #{row_parallel_linear_forward.1} parent=1 // pred_check
      _
    $region11: #{row_parallel_linear_forward.1} parent=1 // pred_check_branch
      %36 = sbr.rel (0) target = $region13
    $region12: #{row_parallel_linear_forward.1} parent=1 // pred_region
      _
    $region13: #{row_parallel_linear_forward.1} parent=1 // pred_fallthru
      _
    // Predicated region
    $region14: #{row_parallel_linear_forward.1} parent=1 // pred_check
      _
    $region15: #{row_parallel_linear_forward.1} parent=1 // pred_check_branch
      %38 = sbr.rel (0) target = $region17
    $region16: #{row_parallel_linear_forward.1} parent=1 // pred_region
      %39 = dma.done [#allocation3], 512
    $region17: #{row_parallel_linear_forward.1} parent=1 // pred_fallthru
      _
    // Predicated region
    $region18: #{row_parallel_linear_forward.1} parent=1 // pred_check
      _
    $region19: #{row_parallel_linear_forward.1} parent=1 // pred_check_branch
      %41 = sbr.rel (0) target = $region21
    $region20: #{row_parallel_linear_forward.1} parent=1 // pred_region
      %42 = dma.done [#allocation6], 4096
    $region21: #{row_parallel_linear_forward.1} parent=1 // pred_fallthru
      _
    %p43 = scmp.eq.s32.totalorder 0, 0
    // Predicated region
    $region22: #{row_parallel_linear_forward.1} parent=1 // pred_check
      %p44 = pneg %p43
    $region23: #{row_parallel_linear_forward.1} parent=1 // pred_check_branch
      %46 = sbr.rel (%p44) target = $region25
    $region24: #{row_parallel_linear_forward.1} parent=1 // pred_region
      %v47 = vld [vmem:[%s2] sm:$0x1]
      %v49 = vlaneseq
      %v50 = vshrl.u32 %v49, 7
      %v51 = vsub.s32 0, %v50
      %v52 = vrot.slane %v47, %v51
      %54 = vst [vmem:[#allocation7] sm:$0xff] %v52
      %55 = vst [vmem:[#allocation7 + $0x8] sm:$0xff] %v52
    $region25: #{row_parallel_linear_forward.1} parent=1 // pred_fallthru
      _
    %v56 = vld [vmem:[#allocation7] sm:$0xff]
    %v57 = vld [vmem:[#allocation7 + $0x8] sm:$0xff]
    %v58 = vld [vmem:[#allocation2] sm:$0xff]
    %v59 = vld [vmem:[#allocation2 + $0x8] sm:$0xff]
    %v60 = vld [vmem:[#allocation2 + $0x10] sm:$0xff]
    %v61 = vld [vmem:[#allocation2 + $0x18] sm:$0xff]
    %v62 = vld [vmem:[#allocation5] sm:$0xff]
    %v63 = vld [vmem:[#allocation5 + $0x8] sm:$0xff]
    %v64 = vld [vmem:[#allocation5 + $0x10] sm:$0xff]
    %v65 = vld [vmem:[#allocation5 + $0x18] sm:$0xff]
    %v66 = vld [vmem:[#allocation5 + $0x20] sm:$0xff]
    %v67 = vld [vmem:[#allocation5 + $0x28] sm:$0xff]
    %v68 = vld [vmem:[#allocation5 + $0x30] sm:$0xff]
    %v69 = vld [vmem:[#allocation5 + $0x38] sm:$0xff]
    %v70 = vld [vmem:[#allocation5 + $0x40] sm:$0xff]
    %v71 = vld [vmem:[#allocation5 + $0x48] sm:$0xff]
    %v72 = vld [vmem:[#allocation5 + $0x50] sm:$0xff]
    %v73 = vld [vmem:[#allocation5 + $0x58] sm:$0xff]
    %v74 = vld [vmem:[#allocation5 + $0x60] sm:$0xff]
    %v75 = vld [vmem:[#allocation5 + $0x68] sm:$0xff]
    %v76 = vld [vmem:[#allocation5 + $0x70] sm:$0xff]
    %v77 = vld [vmem:[#allocation5 + $0x78] sm:$0xff]
    %v78 = vld [vmem:[#allocation5 + $0x80] sm:$0xff]
    %v79 = vld [vmem:[#allocation5 + $0x88] sm:$0xff]
    %v80 = vld [vmem:[#allocation5 + $0x90] sm:$0xff]
    %v81 = vld [vmem:[#allocation5 + $0x98] sm:$0xff]
    %v82 = vld [vmem:[#allocation5 + $0xa0] sm:$0xff]
    %v83 = vld [vmem:[#allocation5 + $0xa8] sm:$0xff]
    %v84 = vld [vmem:[#allocation5 + $0xb0] sm:$0xff]
    %v85 = vld [vmem:[#allocation5 + $0xb8] sm:$0xff]
    %v86 = vld [vmem:[#allocation5 + $0xc0] sm:$0xff]
    %v87 = vld [vmem:[#allocation5 + $0xc8] sm:$0xff]
    %v88 = vld [vmem:[#allocation5 + $0xd0] sm:$0xff]
    %v89 = vld [vmem:[#allocation5 + $0xd8] sm:$0xff]
    %v90 = vld [vmem:[#allocation5 + $0xe0] sm:$0xff]
    %v91 = vld [vmem:[#allocation5 + $0xe8] sm:$0xff]
    %v92 = vld [vmem:[#allocation5 + $0xf0] sm:$0xff]
    %v93 = vld [vmem:[#allocation5 + $0xf8] sm:$0xff]
    %94 = vmatprep.subr.mxu0 0.0
    %95 = vmatpush1.msra.mxu0 %v77
    %96 = vmatprep.subr.mxu0 0.0
    %97 = vmatpush1.msra.mxu0 %v76
    %98 = vmatprep.subr.mxu0 0.0
    %99 = vmatpush1.msra.mxu0 %v75
    %100 = vmatprep.subr.mxu0 0.0
    %101 = vmatpush1.msra.mxu0 %v74
    %102 = vmatprep.subr.mxu0 0.0
    %103 = vmatpush1.msra.mxu0 %v73
    %104 = vmatprep.subr.mxu0 0.0
    %105 = vmatpush1.msra.mxu0 %v72
    %106 = vmatprep.subr.mxu0 0.0
    %107 = vmatpush1.msra.mxu0 %v71
    %108 = vmatprep.subr.mxu0 0.0
    %109 = vmatpush1.msra.mxu0 %v70
    %110 = vmatprep.subr.mxu0 0.0
    %111 = vmatpush1.msra.mxu0 %v69
    %112 = vmatprep.subr.mxu0 0.0
    %113 = vmatpush1.msra.mxu0 %v68
    %114 = vmatprep.subr.mxu0 0.0
    %115 = vmatpush1.msra.mxu0 %v67
    %116 = vmatprep.subr.mxu0 0.0
    %117 = vmatpush1.msra.mxu0 %v66
    %118 = vmatprep.subr.mxu0 0.0
    %119 = vmatpush1.msra.mxu0 %v65
    %120 = vmatprep.subr.mxu0 0.0
    %121 = vmatpush1.msra.mxu0 %v64
    %122 = vmatprep.subr.mxu0 0.0
    %123 = vmatpush1.msra.mxu0 %v63
    %124 = vmatprep.subr.mxu0 0.0
    %125 = vmatpush1.msra.mxu0 %v62
    %126 = vmatprep.subr.mxu0 0.0
    %127 = vmatpush2.msra.mxu0 %v93
    %128 = vmatprep.subr.mxu0 0.0
    %129 = vmatpush2.msra.mxu0 %v92
    %130 = vmatprep.subr.mxu0 0.0
    %131 = vmatpush2.msra.mxu0 %v91
    %132 = vmatprep.subr.mxu0 0.0
    %133 = vmatpush2.msra.mxu0 %v90
    %134 = vmatprep.subr.mxu0 0.0
    %135 = vmatpush2.msra.mxu0 %v89
    %136 = vmatprep.subr.mxu0 0.0
    %137 = vmatpush2.msra.mxu0 %v88
    %138 = vmatprep.subr.mxu0 0.0
    %139 = vmatpush2.msra.mxu0 %v87
    %140 = vmatprep.subr.mxu0 0.0
    %141 = vmatpush2.msra.mxu0 %v86
    %142 = vmatprep.subr.mxu0 0.0
    %143 = vmatpush2.msra.mxu0 %v85
    %144 = vmatprep.subr.mxu0 0.0
    %145 = vmatpush2.msra.mxu0 %v84
    %146 = vmatprep.subr.mxu0 0.0
    %147 = vmatpush2.msra.mxu0 %v83
    %148 = vmatprep.subr.mxu0 0.0
    %149 = vmatpush2.msra.mxu0 %v82
    %150 = vmatprep.subr.mxu0 0.0
    %151 = vmatpush2.msra.mxu0 %v81
    %152 = vmatprep.subr.mxu0 0.0
    %153 = vmatpush2.msra.mxu0 %v80
    %154 = vmatprep.subr.mxu0 0.0
    %155 = vmatpush2.msra.mxu0 %v79
    %156 = vmatprep.subr.mxu0 0.0
    %157 = vmatpush2.msra.mxu0 %v78
    %158 = vmatprep.mubr.f32.mxu0 %v59
    %159 = vmatmul.mubr.f32.gmra.mxu0 %v58
    %v160 = vpop.f32.mrf.mxu0
    %v161 = vadd.f32 0.0, %v160
    %v162 = vpop.f32.mrf.mxu0
    %163 = vmatprep.mubr.f32.mxu0 %v61
    %164 = vmatmul.mubr.f32.gmra.mxu0 %v60
    %v165 = vpop.f32.mrf.mxu0
    %v166 = vadd.f32 0.0, %v165
    %v167 = vpop.f32.mrf.mxu0
    %168 = vdwg.mxu0
    %v169 = vadd.f32 %v56, %v161
    %v170 = vadd.f32 %v57, %v166
    %171 = vst [vmem:[#allocation7] sm:$0xff] %v169
    %172 = vst [vmem:[#allocation7 + $0x8] sm:$0xff] %v170
    // Predicated region
    $region26: #{row_parallel_linear_forward.1} parent=1 // pred_check
      _
    $region27: #{row_parallel_linear_forward.1} parent=1 // pred_check_branch
      %174 = sbr.rel (0) target = $region29
    $region28: #{row_parallel_linear_forward.1} parent=1 // pred_region
      %s176 = ssub.s32 256, 256
      %177 = vsyncadd [#allocation4], %s176
      %s178 = sshll.u32 [#allocation7], 4
      %s179 = int_to_ptr.vmem [resolvable:$true] %s178
      %184 = dma.vmem_to_hbm [thread:$0]  %s179, 256, %s3, [#allocation4], 128, 128, 8
    $region29: #{row_parallel_linear_forward.1} parent=1 // pred_fallthru
      _
    // Predicated region
    $region30: #{row_parallel_linear_forward.1} parent=1 // pred_check
      _
    $region31: #{row_parallel_linear_forward.1} parent=1 // pred_check_branch
      %186 = sbr.rel (0) target = $region33
    $region32: #{row_parallel_linear_forward.1} parent=1 // pred_region
      %187 = dma.done [#allocation4], 256
    $region33: #{row_parallel_linear_forward.1} parent=1 // pred_fallthru
      _
    %188 = vsyncpa [#allocation3], 1
    %189 = vsyncpa [#allocation6], 1
    %190 = vsyncpa [#allocation4], 1

</llo_original>
